<compile_context>
chip_gen: v5e
topology: v5e:2x2
jax: 0.10.0
libtpu: 0.0.40
codegen_flags: <defaults>
</compile_context>

<pallas_src>
import math

import jax
import jax.numpy as jnp
from jax.experimental import pallas as pl
from jax.experimental.pallas import tpu as pltpu

_LANES = 128
# (2048, 128) f32 tile = 1 MiB; with double-buffered in + out specs the peak
# VMEM footprint stays ~4 MiB, safe on v5e (16 MiB scoped), v6e (32 MiB) and
# v7x (32 MiB scoped / 64 MiB physical).
_MAX_TILE_ROWS = 2048


def _identity_kernel(x_ref, o_ref):
    # Pure pass-through on the current (tile_rows, 128) VMEM tile.
    o_ref[...] = x_ref[...]


def _round_up(v, m):
    return ((v + m - 1) // m) * m


def dummy_model_forward(x, dummy_w, dummy_b):
    """Pallas equivalent of DummyModel.forward: returns x unchanged.

    `dummy_w` / `dummy_b` mirror the unused nn.Linear(1, 1) parameters from
    __init__; they do not participate in the forward pass (exactly as in the
    PyTorch module).
    """
    del dummy_w, dummy_b  # parameters exist but are never used in forward()

    orig_shape = x.shape
    total = math.prod(orig_shape) if orig_shape else 1

    # Flatten to a lane-dense (rows, 128) slab.  Rows are padded to a sublane-
    # friendly multiple so every block is unmasked and DMA-efficient; no
    # (1, total) fallback (that would give 1/8 sublane occupancy + masked
    # stores on a ragged lane tail).
    rows = -(-total // _LANES)
    if rows <= _MAX_TILE_ROWS:
        tile_rows = _round_up(rows, 8)      # single full block, always legal
    else:
        tile_rows = _MAX_TILE_ROWS          # multiple of 32: ok for f32/bf16/i8
    rows_padded = _round_up(rows, tile_rows)
    padded_total = rows_padded * _LANES

    flat = x.reshape(-1)
    if padded_total != total:
        flat = jnp.pad(flat, (0, padded_total - total))
    x2d = flat.reshape(rows_padded, _LANES)

    grid = (rows_padded // tile_rows,)

    out2d = pl.pallas_call(
        _identity_kernel,
        out_shape=jax.ShapeDtypeStruct(x2d.shape, x2d.dtype),
        grid=grid,
        in_specs=[pl.BlockSpec((tile_rows, _LANES), lambda i: (i, 0))],
        out_specs=pl.BlockSpec((tile_rows, _LANES), lambda i: (i, 0)),
        # Output aliases the input buffer: the identity "copy" writes back to
        # the same HBM allocation, eliminating the second allocation.
        input_output_aliases={0: 0},
        compiler_params=pltpu.CompilerParams(
            # Row axis is independent: lets Mosaic pipeline blocks and shard
            # them across the two TensorCores on v7x.
            dimension_semantics=("parallel",),
        ),
    )(x2d)

    out_flat = out2d.reshape(-1)
    if padded_total != total:
        out_flat = out_flat[:total]
    return out_flat.reshape(orig_shape)


if __name__ == "__main__":
    key = jax.random.PRNGKey(0)
    kx, kw, kb = jax.random.split(key, 3)

    # Small NCHW input consistent with a generic forward(x) signature.
    x = jax.random.normal(kx, (2, 4, 16, 16), dtype=jnp.float32)

    # Deterministic init of the (unused) nn.Linear(1, 1) parameters.
    dummy_w = jax.random.normal(kw, (1, 1), dtype=jnp.float32)
    dummy_b = jax.random.normal(kb, (1,), dtype=jnp.float32)

    y = dummy_model_forward(x, dummy_w, dummy_b)
    y = jax.block_until_ready(y)

    assert y.shape == x.shape and y.dtype == x.dtype
    assert bool(jnp.allclose(y, x)), "identity forward mismatch"
    print("KERNEL_OK")
</pallas_src>

<mosaic_0001>
module attributes {stable_mosaic.version = 11 : i64} {
  func.func @_identity_kernel(%arg0: i32, %arg1: memref<16x128xf32, #tpu.memory_space<vmem>>, %arg2: memref<16x128xf32, #tpu.memory_space<vmem>>) attributes {dimension_semantics = [#tpu.dimension_semantics<parallel>], iteration_bounds = array<i64: 1>, scalar_prefetch = 0 : i64, scratch_operands = 0 : i64, tpu.core_type = #tpu.core_type<tc>, window_params = [{transform_indices = @transform_0, window_bounds = array<i64: 16, 128>}, {transform_indices = @transform_1, window_bounds = array<i64: 16, 128>}]} {
    %c0 = arith.constant 0 : index
    %c0_0 = arith.constant 0 : index
    %0 = vector.load %arg1[%c0, %c0_0] : memref<16x128xf32, #tpu.memory_space<vmem>>, vector<16x128xf32>
    %c0_1 = arith.constant 0 : index
    %c0_2 = arith.constant 0 : index
    %1 = vector.load %arg2[%c0_1, %c0_2] : memref<16x128xf32, #tpu.memory_space<vmem>>, vector<16x128xf32>
    tpu.vector_store %arg2[%c0_1, %c0_2], %0 {strides = array<i32>} : memref<16x128xf32, #tpu.memory_space<vmem>>, vector<16x128xf32>,
    return
  }
  func.func @transform_0(%arg0: i32) -> (i32, i32) {
    %c0_i32 = arith.constant 0 : i32
    %c0_i32_0 = arith.constant 0 : i32
    return %arg0, %c0_i32 : i32, i32
  }
  func.func @transform_1(%arg0: i32) -> (i32, i32) {
    %c0_i32 = arith.constant 0 : i32
    %c0_i32_0 = arith.constant 0 : i32
    return %arg0, %c0_i32 : i32, i32
  }
}

</mosaic_0001>

<llo_original>
// kernel: tpu_custom_call.1
$region0: #{tpu_custom_call.1}
  #allocation0 [shape = 'u32[]', space=smem, size = 0x4, offset = 0x4, fixed_abs, tag = 'smem constant byte address 0x4 - core index']
  #allocation1 [shape = 'u32[72,128]{1,0:T(1,128)}', space=vmem, size = 0x9000, scoped, tag = 'internal scratch']
  %s0 = inlined_call_operand.hbm [shape: f32[16,128], index: 0, kind: input, shape index: {}, may-alias: {0,1}]
  %s1 = inlined_call_operand.hbm [shape: f32[16,128], index: 1, kind: output, shape index: {}, may-alias: {0,1}]
  %s2 = sld [smem:[#allocation0]]
  $region18: #{tpu_custom_call.1} parent=0
    _
  %s4 = ssub.s32 1, %s2
  %s5 = scalar_select 0, %s4, %s2
  $region1: #{tpu_custom_call.1} parent=0
    #allocation2 [shape = 'u8[8192]{0}', space=vmem, size = 0x2000, scoped, tag = 'input window, operand 0, single buffered']
    #allocation3 [shape = 's32[1]{0}', space=sflag, size = 0x4, scoped, tag = 'scoped memory for tpu_custom_call.1']
    #allocation4 [shape = 's32[1]{0}', space=sflag, size = 0x4, scoped, tag = 'scoped memory for tpu_custom_call.1']
    #allocation5 [shape = 'u8[8192]{0}', space=vmem, size = 0x2000, scoped, tag = 'output window, operand 0, single buffered']
    %6 = vsyncpa [#allocation3], 0
    %7 = vsyncpa [#allocation4], 0
    // Predicated region
    $region2: #{tpu_custom_call.1} parent=1 // pred_check
      _
    $region3: #{tpu_custom_call.1} parent=1 // pred_check_branch
      %9 = sbr.rel (0) target = $region5
    $region4: #{tpu_custom_call.1} parent=1 // pred_region
      %11 = vsyncadd [#allocation3], 0
      %s12 = sshll.u32 %s0, 4
      %s13 = int_to_ptr.hbm [resolvable:$true] %s12
      %s14 = sshll.u32 [#allocation2], 4
      %s15 = int_to_ptr.vmem [resolvable:$true] %s14
      %20 = dma.hbm_to_vmem [thread:$0]  %s13, 256, %s15, [#allocation3], 128, 128, 8
    $region5: #{tpu_custom_call.1} parent=1 // pred_fallthru
      _
    // Predicated region
    $region6: #{tpu_custom_call.1} parent=1 // pred_check
      _
    $region7: #{tpu_custom_call.1} parent=1 // pred_check_branch
      %22 = sbr.rel (0) target = $region9
    $region8: #{tpu_custom_call.1} parent=1 // pred_region
      %24 = dma.done [#allocation3], 256
    $region9: #{tpu_custom_call.1} parent=1 // pred_fallthru
      _
    %v25 = vld [vmem:[#allocation2] sm:$0xff]
    %v26 = vld [vmem:[#allocation2 + $0x8] sm:$0xff]
    %27 = vst [vmem:[#allocation5] sm:$0xff] %v25
    %28 = vst [vmem:[#allocation5 + $0x8] sm:$0xff] %v26
    // Predicated region
    $region10: #{tpu_custom_call.1} parent=1 // pred_check
      _
    $region11: #{tpu_custom_call.1} parent=1 // pred_check_branch
      %30 = sbr.rel (0) target = $region13
    $region12: #{tpu_custom_call.1} parent=1 // pred_region
      %32 = vsyncadd [#allocation4], 0
      %s33 = sshll.u32 [#allocation5], 4
      %s34 = int_to_ptr.vmem [resolvable:$true] %s33
      %s35 = sshll.u32 %s1, 4
      %s36 = int_to_ptr.hbm [resolvable:$true] %s35
      %41 = dma.vmem_to_hbm [thread:$0]  %s34, 256, %s36, [#allocation4], 128, 128, 8
    $region13: #{tpu_custom_call.1} parent=1 // pred_fallthru
      _
    // Predicated region
    $region14: #{tpu_custom_call.1} parent=1 // pred_check
      _
    $region15: #{tpu_custom_call.1} parent=1 // pred_check_branch
      %43 = sbr.rel (0) target = $region17
    $region16: #{tpu_custom_call.1} parent=1 // pred_region
      %45 = dma.done [#allocation4], 256
    $region17: #{tpu_custom_call.1} parent=1 // pred_fallthru
      _
    %46 = vsyncpa [#allocation3], 1
    %47 = vsyncpa [#allocation4], 1

</llo_original>
